<compile_context>
chip_gen: v7x
topology: tpu7x:2x2x1
jax: 0.10.0
libtpu: 0.0.40
codegen_flags: <defaults>
</compile_context>

<pallas_src>
import functools

import jax
import jax.numpy as jnp
from jax.experimental import pallas as pl
from jax.experimental.pallas import tpu as pltpu


def _thermo_head_kernel(lat_ref, w_ref, b_ref, o_ref):
    # lat_ref: (Bt, E, L, D)   latent block for this grid step
    # w_ref:   (D, C_pad)      transposed Linear weight, pre-scaled by 1/E, zero-padded
    # b_ref:   (1, C_pad)      zero-padded bias
    # o_ref:   (Bt, L, C_pad)  lane-dense output block
    Bt, E, L, D = lat_ref.shape
    C_pad = o_ref.shape[-1]

    x = lat_ref[...].astype(jnp.float32)       # f32 accumulate (v5e VPU has no bf16)
    sum_e = jnp.sum(x, axis=1)                 # (Bt, L, D); 1/E is folded into w_pad
    lhs = sum_e.reshape(Bt * L, D)             # trivial relayout (L % 8 == 0): M = Bt*L
    if w_ref.dtype == jnp.bfloat16:            # native bf16 MXU operands on v6e/v7x
        lhs = lhs.astype(jnp.bfloat16)
    out = jnp.dot(lhs, w_ref[...],             # single MXU matmul per grid step
                  preferred_element_type=jnp.float32)
    out = out + b_ref[...]                     # (Bt*L, C_pad) + (1, C_pad) broadcast
    o_ref[...] = out.reshape(Bt, L, C_pad).astype(o_ref.dtype)


def prepare_thermo_head_params(weight, bias, num_alignments):
    """One-time parameter prep (hoisted out of the per-forward path).

    weight: [C, D] (PyTorch nn.Linear layout), bias: [C], num_alignments: E.
    Returns (w_pad [D, C_pad], b_pad [1, C_pad]).
    Invariant: padded columns (>= C) of BOTH w_pad and b_pad are zero.
    The 1/E mean scale is folded into w_pad, so these params are tied to this E.
    """
    C, D = weight.shape
    C_pad = max(128, ((C + 127) // 128) * 128)
    w_scaled = (weight / jnp.asarray(num_alignments, weight.dtype)).T      # (D, C)
    w_pad = jnp.zeros((D, C_pad), dtype=weight.dtype).at[:, :C].set(w_scaled)
    b_pad = jnp.zeros((1, C_pad), dtype=jnp.float32).at[0, :C].set(bias.astype(jnp.float32))
    return w_pad, b_pad


@functools.partial(jax.jit, static_argnames=("num_classes", "batch_block"))
def thermo_stable_head(latent, w_pad, b_pad, *, num_classes, batch_block=None):
    """Default-path forward: latent [B, E, L, D] -> [B, L, num_classes] (f32)."""
    B, E, L, D = latent.shape
    C_pad = w_pad.shape[1]
    Bt = B if batch_block is None else min(batch_block, B)
    if B % Bt != 0:
        raise ValueError(f"batch_block={Bt} must divide B={B}")
    # At production MSA shapes (E~128, L~1k) add an E grid axis + f32 accumulator (or
    # tile L) before the per-step block outgrows v7x's 64 MiB VMEM; fine as-is here.

    out_pad = pl.pallas_call(
        _thermo_head_kernel,
        out_shape=jax.ShapeDtypeStruct((B, L, C_pad), jnp.float32),
        grid_spec=pltpu.PrefetchScalarGridSpec(
            num_scalar_prefetch=0,
            grid=(B // Bt,),
            in_specs=[
                pl.BlockSpec((Bt, E, L, D), lambda b: (b, 0, 0, 0)),
                pl.BlockSpec((D, C_pad), lambda b: (0, 0)),
                pl.BlockSpec((1, C_pad), lambda b: (0, 0)),
            ],
            out_specs=pl.BlockSpec((Bt, L, C_pad), lambda b: (b, 0, 0)),
        ),
        compiler_params=pltpu.CompilerParams(
            dimension_semantics=("parallel",),   # v7x: both TCs can take batch blocks
        ),
    )(latent, w_pad, b_pad)

    # Slice the zero-padded classes back off (keep the padded tensor instead if the
    # consumer only does softmax/argmax over the C logits).
    return out_pad[:, :, :num_classes]


if __name__ == "__main__":
    # Small shapes consistent with the module: B=2, E=8 (MSA rows), L=16 (seq), D=32, C=4.
    B, E, L, D, C = 2, 8, 16, 32, 4

    key = jax.random.PRNGKey(0)
    k_lat, k_w, k_b = jax.random.split(key, 3)

    latent = jax.random.normal(k_lat, (B, E, L, D), dtype=jnp.float32)
    # Deterministic "Linear(d, num_classes)" params (synthetic init, not a checkpoint).
    weight = jax.random.normal(k_w, (C, D), dtype=jnp.float32) * (1.0 / D**0.5)
    bias = jax.random.normal(k_b, (C,), dtype=jnp.float32) * 0.01

    # One-time parameter prep, outside the per-call path.
    w_pad, b_pad = prepare_thermo_head_params(weight, bias, num_alignments=E)
    w_pad, b_pad = jax.block_until_ready((w_pad, b_pad))

    out = thermo_stable_head(latent, w_pad, b_pad, num_classes=C)
    out = jax.block_until_ready(out)

    # Pure-JAX reference: mean over E of (latent @ W.T + b)
    ref = jnp.mean(jnp.einsum("beld,cd->belc", latent, weight) + bias, axis=1)
    assert out.shape == (B, L, C), out.shape
    assert jnp.allclose(out, ref, atol=1e-5, rtol=1e-5), (
        float(jnp.max(jnp.abs(out - ref)))
    )

    print("KERNEL_OK")
</pallas_src>

<mosaic_0001>
module attributes {stable_mosaic.version = 11 : i64} {
  func.func @_thermo_head_kernel(%arg0: i32, %arg1: memref<2x8x16x32xf32, #tpu.memory_space<vmem>>, %arg2: memref<32x128xf32, #tpu.memory_space<vmem>>, %arg3: memref<1x128xf32, #tpu.memory_space<vmem>>, %arg4: memref<2x16x128xf32, #tpu.memory_space<vmem>>) attributes {dimension_semantics = [#tpu.dimension_semantics<parallel>], iteration_bounds = array<i64: 1>, scalar_prefetch = 0 : i64, scratch_operands = 0 : i64, tpu.core_type = #tpu.core_type<tc>, window_params = [{transform_indices = @transform_0, window_bounds = array<i64: 2, 8, 16, 32>}, {pipeline_mode = #tpu.pipeline_mode<synchronous>, transform_indices = @transform_1, window_bounds = array<i64: 32, 128>}, {pipeline_mode = #tpu.pipeline_mode<synchronous>, transform_indices = @transform_2, window_bounds = array<i64: 1, 128>}, {transform_indices = @transform_3, window_bounds = array<i64: 2, 16, 128>}]} {
    %c0 = arith.constant 0 : index
    %c0_0 = arith.constant 0 : index
    %c0_1 = arith.constant 0 : index
    %c0_2 = arith.constant 0 : index
    %0 = vector.load %arg1[%c0, %c0_0, %c0_1, %c0_2] : memref<2x8x16x32xf32, #tpu.memory_space<vmem>>, vector<2x8x16x32xf32>
    %cst = arith.constant dense<0.000000e+00> : vector<2x16x32xf32>
    %1 = vector.multi_reduction <add>, %0, %cst [1] : vector<2x8x16x32xf32> to vector<2x16x32xf32>
    %2 = vector.shape_cast %1 : vector<2x16x32xf32> to vector<32x32xf32>
    %c0_3 = arith.constant 0 : index
    %c0_4 = arith.constant 0 : index
    %3 = vector.load %arg2[%c0_3, %c0_4] : memref<32x128xf32, #tpu.memory_space<vmem>>, vector<32x128xf32>
    %cst_5 = arith.constant dense<0.000000e+00> : vector<32x128xf32>
    %4 = tpu.matmul %2, %3, %cst_5 {dimension_numbers = #tpu.dot_dimension_numbers<[1], [0], [0], [1], [0, 0, 1, 1], [], []>} : vector<32x32xf32>, vector<32x128xf32>, vector<32x128xf32> -> vector<32x128xf32>
    %c0_6 = arith.constant 0 : index
    %c0_7 = arith.constant 0 : index
    %5 = vector.load %arg3[%c0_6, %c0_7] : memref<1x128xf32, #tpu.memory_space<vmem>>, vector<1x128xf32>
    %6 = vector.broadcast %5 : vector<1x128xf32> to vector<32x128xf32>
    %7 = arith.addf %4, %6 : vector<32x128xf32>
    %8 = vector.shape_cast %7 : vector<32x128xf32> to vector<2x16x128xf32>
    %c0_8 = arith.constant 0 : index
    %c0_9 = arith.constant 0 : index
    %c0_10 = arith.constant 0 : index
    %9 = vector.load %arg4[%c0_8, %c0_9, %c0_10] : memref<2x16x128xf32, #tpu.memory_space<vmem>>, vector<2x16x128xf32>
    tpu.vector_store %arg4[%c0_8, %c0_9, %c0_10], %8 {strides = array<i32>} : memref<2x16x128xf32, #tpu.memory_space<vmem>>, vector<2x16x128xf32>,
    return
  }
  func.func @transform_0(%arg0: i32) -> (i32, i32, i32, i32) {
    %c0_i32 = arith.constant 0 : i32
    %c0_i32_0 = arith.constant 0 : i32
    %c0_i32_1 = arith.constant 0 : i32
    %c0_i32_2 = arith.constant 0 : i32
    return %arg0, %c0_i32, %c0_i32_0, %c0_i32_1 : i32, i32, i32, i32
  }
  func.func @transform_1(%arg0: i32) -> (i32, i32) {
    %c0_i32 = arith.constant 0 : i32
    %c0_i32_0 = arith.constant 0 : i32
    %c0_i32_1 = arith.constant 0 : i32
    return %c0_i32, %c0_i32_0 : i32, i32
  }
  func.func @transform_2(%arg0: i32) -> (i32, i32) {
    %c0_i32 = arith.constant 0 : i32
    %c0_i32_0 = arith.constant 0 : i32
    %c0_i32_1 = arith.constant 0 : i32
    return %c0_i32, %c0_i32_0 : i32, i32
  }
  func.func @transform_3(%arg0: i32) -> (i32, i32, i32) {
    %c0_i32 = arith.constant 0 : i32
    %c0_i32_0 = arith.constant 0 : i32
    %c0_i32_1 = arith.constant 0 : i32
    return %arg0, %c0_i32, %c0_i32_0 : i32, i32, i32
  }
}

</mosaic_0001>

<llo_original>
// kernel: thermo_stable_head.1
$region0: #{thermo_stable_head.1}
  #allocation0 [shape = 'u32[]', space=smem, size = 0x4, offset = 0x4, fixed_abs, tag = 'smem constant byte address 0x4 - core index']
  #allocation1 [shape = 'u32[144,128]{1,0:T(1,128)}', space=vmem, size = 0x12000, scoped, tag = 'internal scratch']
  %s0 = inlined_call_operand.hbm [shape: f32[2,8,16,32], index: 0, kind: input, shape index: {}]
  %s1 = inlined_call_operand.hbm [shape: f32[32,128], index: 1, kind: input, shape index: {}]
  %s2 = inlined_call_operand.vmem [shape: f32[1,128], index: 2, kind: input, shape index: {}]
  %s3 = inlined_call_operand.vmem [shape: f32[2,16,128], index: 3, kind: output, shape index: {}]
  %s4 = sld [smem:[#allocation0]]
  $region30: #{thermo_stable_head.1} parent=0
    _
  %s6 = ssub.s32 1, %s4
  %s7 = scalar_select 0, %s6, %s4
  $region1: #{thermo_stable_head.1} parent=0
    #allocation2 [shape = 'u8[131072]{0}', space=vmem, size = 0x20000, scoped, tag = 'input window, operand 0, single buffered']
    #allocation3 [shape = 's32[1]{0}', space=sflag, size = 0x4, scoped, tag = 'scoped memory for thermo_stable_head.1']
    #allocation4 [shape = 'u8[16384]{0}', space=vmem, size = 0x4000, scoped, tag = 'input window, operand 1, single buffered']
    #allocation5 [shape = 's32[1]{0}', space=sflag, size = 0x4, scoped, tag = 'scoped memory for thermo_stable_head.1']
    %8 = vsyncpa [#allocation3], 0
    %9 = vsyncpa [#allocation5], 0
    // Predicated region
    $region2: #{thermo_stable_head.1} parent=1 // pred_check
      _
    $region3: #{thermo_stable_head.1} parent=1 // pred_check_branch
      %11 = sbr.rel (0) target = $region5
    $region4: #{thermo_stable_head.1} parent=1 // pred_region
      %s13 = ssub.s32 4096, 4096
      %14 = vsyncadd [#allocation3], %s13
      %s15 = sshll.u32 [#allocation2], 4
      %s16 = int_to_ptr.vmem [resolvable:$true] %s15
      %21 = dma.hbm_to_vmem [thread:$0]  %s0, 4096, %s16, [#allocation3], 128, 128, 8
    $region5: #{thermo_stable_head.1} parent=1 // pred_fallthru
      _
    // Predicated region
    $region6: #{thermo_stable_head.1} parent=1 // pred_check
      _
    $region7: #{thermo_stable_head.1} parent=1 // pred_check_branch
      %23 = sbr.rel (0) target = $region9
    $region8: #{thermo_stable_head.1} parent=1 // pred_region
      %s25 = ssub.s32 512, 512
      %26 = vsyncadd [#allocation5], %s25
      %s27 = sshll.u32 [#allocation4], 4
      %s28 = int_to_ptr.vmem [resolvable:$true] %s27
      %33 = dma.hbm_to_vmem [thread:$0]  %s1, 512, %s28, [#allocation5], 128, 128, 8
    $region9: #{thermo_stable_head.1} parent=1 // pred_fallthru
      _
    // Predicated region
    $region10: #{thermo_stable_head.1} parent=1 // pred_check
      _
    $region11: #{thermo_stable_head.1} parent=1 // pred_check_branch
      %35 = sbr.rel (0) target = $region13
    $region12: #{thermo_stable_head.1} parent=1 // pred_region
      _
    $region13: #{thermo_stable_head.1} parent=1 // pred_fallthru
      _
    // Predicated region
    $region14: #{thermo_stable_head.1} parent=1 // pred_check
      _
    $region15: #{thermo_stable_head.1} parent=1 // pred_check_branch
      %37 = sbr.rel (0) target = $region17
    $region16: #{thermo_stable_head.1} parent=1 // pred_region
      %38 = dma.done [#allocation3], 4096
    $region17: #{thermo_stable_head.1} parent=1 // pred_fallthru
      _
    // Predicated region
    $region18: #{thermo_stable_head.1} parent=1 // pred_check
      _
    $region19: #{thermo_stable_head.1} parent=1 // pred_check_branch
      %40 = sbr.rel (0) target = $region21
    $region20: #{thermo_stable_head.1} parent=1 // pred_region
      %41 = dma.done [#allocation5], 512
    $region21: #{thermo_stable_head.1} parent=1 // pred_fallthru
      _
    %v42 = vld [vmem:[#allocation2] sm:$0xff]
    %v43 = vld [vmem:[#allocation2 + $0x8] sm:$0xff]
    %v44 = vld [vmem:[#allocation2 + $0x10] sm:$0xff]
    %v45 = vld [vmem:[#allocation2 + $0x18] sm:$0xff]
    %v46 = vld [vmem:[#allocation2 + $0x20] sm:$0xff]
    %v47 = vld [vmem:[#allocation2 + $0x28] sm:$0xff]
    %v48 = vld [vmem:[#allocation2 + $0x30] sm:$0xff]
    %v49 = vld [vmem:[#allocation2 + $0x38] sm:$0xff]
    %v50 = vld [vmem:[#allocation2 + $0x40] sm:$0xff]
    %v51 = vld [vmem:[#allocation2 + $0x48] sm:$0xff]
    %v52 = vld [vmem:[#allocation2 + $0x50] sm:$0xff]
    %v53 = vld [vmem:[#allocation2 + $0x58] sm:$0xff]
    %v54 = vld [vmem:[#allocation2 + $0x60] sm:$0xff]
    %v55 = vld [vmem:[#allocation2 + $0x68] sm:$0xff]
    %v56 = vld [vmem:[#allocation2 + $0x70] sm:$0xff]
    %v57 = vld [vmem:[#allocation2 + $0x78] sm:$0xff]
    %v58 = vld [vmem:[#allocation2 + $0x80] sm:$0xff]
    %v59 = vld [vmem:[#allocation2 + $0x88] sm:$0xff]
    %v60 = vld [vmem:[#allocation2 + $0x90] sm:$0xff]
    %v61 = vld [vmem:[#allocation2 + $0x98] sm:$0xff]
    %v62 = vld [vmem:[#allocation2 + $0xa0] sm:$0xff]
    %v63 = vld [vmem:[#allocation2 + $0xa8] sm:$0xff]
    %v64 = vld [vmem:[#allocation2 + $0xb0] sm:$0xff]
    %v65 = vld [vmem:[#allocation2 + $0xb8] sm:$0xff]
    %v66 = vld [vmem:[#allocation2 + $0xc0] sm:$0xff]
    %v67 = vld [vmem:[#allocation2 + $0xc8] sm:$0xff]
    %v68 = vld [vmem:[#allocation2 + $0xd0] sm:$0xff]
    %v69 = vld [vmem:[#allocation2 + $0xd8] sm:$0xff]
    %v70 = vld [vmem:[#allocation2 + $0xe0] sm:$0xff]
    %v71 = vld [vmem:[#allocation2 + $0xe8] sm:$0xff]
    %v72 = vld [vmem:[#allocation2 + $0xf0] sm:$0xff]
    %v73 = vld [vmem:[#allocation2 + $0xf8] sm:$0xff]
    %vm74 = vcmask 261120
    %v75 = vsel %vm74, %v42, 0.0
    %v76 = vsel %vm74, %v44, 0.0
    %v77 = vadd.f32 %v75, %v76
    %v78 = vsel %vm74, %v46, 0.0
    %v79 = vadd.f32 %v77, %v78
    %v80 = vsel %vm74, %v48, 0.0
    %v81 = vadd.f32 %v79, %v80
    %v82 = vsel %vm74, %v50, 0.0
    %v83 = vadd.f32 %v81, %v82
    %v84 = vsel %vm74, %v52, 0.0
    %v85 = vadd.f32 %v83, %v84
    %v86 = vsel %vm74, %v54, 0.0
    %v87 = vadd.f32 %v85, %v86
    %v88 = vsel %vm74, %v56, 0.0
    %v89 = vadd.f32 %v87, %v88
    %v90 = vsel %vm74, %v43, 0.0
    %v91 = vsel %vm74, %v45, 0.0
    %v92 = vadd.f32 %v90, %v91
    %v93 = vsel %vm74, %v47, 0.0
    %v94 = vadd.f32 %v92, %v93
    %v95 = vsel %vm74, %v49, 0.0
    %v96 = vadd.f32 %v94, %v95
    %v97 = vsel %vm74, %v51, 0.0
    %v98 = vadd.f32 %v96, %v97
    %v99 = vsel %vm74, %v53, 0.0
    %v100 = vadd.f32 %v98, %v99
    %v101 = vsel %vm74, %v55, 0.0
    %v102 = vadd.f32 %v100, %v101
    %v103 = vsel %vm74, %v57, 0.0
    %v104 = vadd.f32 %v102, %v103
    %v105 = vsel %vm74, %v58, 0.0
    %v106 = vsel %vm74, %v60, 0.0
    %v107 = vadd.f32 %v105, %v106
    %v108 = vsel %vm74, %v62, 0.0
    %v109 = vadd.f32 %v107, %v108
    %v110 = vsel %vm74, %v64, 0.0
    %v111 = vadd.f32 %v109, %v110
    %v112 = vsel %vm74, %v66, 0.0
    %v113 = vadd.f32 %v111, %v112
    %v114 = vsel %vm74, %v68, 0.0
    %v115 = vadd.f32 %v113, %v114
    %v116 = vsel %vm74, %v70, 0.0
    %v117 = vadd.f32 %v115, %v116
    %v118 = vsel %vm74, %v72, 0.0
    %v119 = vadd.f32 %v117, %v118
    %v120 = vsel %vm74, %v59, 0.0
    %v121 = vsel %vm74, %v61, 0.0
    %v122 = vadd.f32 %v120, %v121
    %v123 = vsel %vm74, %v63, 0.0
    %v124 = vadd.f32 %v122, %v123
    %v125 = vsel %vm74, %v65, 0.0
    %v126 = vadd.f32 %v124, %v125
    %v127 = vsel %vm74, %v67, 0.0
    %v128 = vadd.f32 %v126, %v127
    %v129 = vsel %vm74, %v69, 0.0
    %v130 = vadd.f32 %v128, %v129
    %v131 = vsel %vm74, %v71, 0.0
    %v132 = vadd.f32 %v130, %v131
    %v133 = vsel %vm74, %v73, 0.0
    %v134 = vadd.f32 %v132, %v133
    %v135 = vld [vmem:[#allocation4] sm:$0xff]
    %v136 = vld [vmem:[#allocation4 + $0x8] sm:$0xff]
    %v137 = vld [vmem:[#allocation4 + $0x10] sm:$0xff]
    %v138 = vld [vmem:[#allocation4 + $0x18] sm:$0xff]
    %v139 = vld [vmem:[%s2] sm:$0x1]
    %v141 = vlaneseq
    %v142 = vshrl.u32 %v141, 7
    %v143 = vsub.s32 0, %v142
    %v144 = vrot.slane %v139, %v143
    %v147 = vsel %vm74, %v89, 0
    %v150 = vsel %vm74, %v104, 0
    %v153 = vsel %vm74, %v119, 0
    %v156 = vsel %vm74, %v134, 0
    %158 = vmatprep.subr.mxu0 0.0
    %159 = vmatpush1.msra.mxu0 %v135
    %160 = vmatprep.subr.mxu0 0.0
    %161 = vmatpush1.msra.mxu0 %v136
    %162 = vmatprep.subr.mxu0 0.0
    %163 = vmatpush1.msra.mxu0 %v137
    %164 = vmatprep.subr.mxu0 0.0
    %165 = vmatpush1.msra.mxu0 %v138
    %166 = vmatprep.subr.mxu0 0.0
    %167 = vmatpush1.msra.mxu0 0.0
    %168 = vmatprep.subr.mxu0 0.0
    %169 = vmatpush1.msra.mxu0 0.0
    %170 = vmatprep.subr.mxu0 0.0
    %171 = vmatpush1.msra.mxu0 0.0
    %172 = vmatprep.subr.mxu0 0.0
    %173 = vmatpush1.msra.mxu0 0.0
    %174 = vmatprep.subr.mxu0 0.0
    %175 = vmatpush1.msra.mxu0 0.0
    %176 = vmatprep.subr.mxu0 0.0
    %177 = vmatpush1.msra.mxu0 0.0
    %178 = vmatprep.subr.mxu0 0.0
    %179 = vmatpush1.msra.mxu0 0.0
    %180 = vmatprep.subr.mxu0 0.0
    %181 = vmatpush1.msra.mxu0 0.0
    %182 = vmatprep.subr.mxu0 0.0
    %183 = vmatpush1.msra.mxu0 0.0
    %184 = vmatprep.subr.mxu0 0.0
    %185 = vmatpush1.msra.mxu0 0.0
    %186 = vmatprep.subr.mxu0 0.0
    %187 = vmatpush1.msra.mxu0 0.0
    %188 = vmatprep.subr.mxu0 0.0
    %189 = vmatpush1.msra.mxu0 0.0
    %190 = vmatprep.subr.mxu0 0.0
    %191 = vmatpush1.msra.mxu0 0.0
    %192 = vmatprep.subr.mxu0 0.0
    %193 = vmatpush1.msra.mxu0 0.0
    %194 = vmatprep.subr.mxu0 0.0
    %195 = vmatpush1.msra.mxu0 0.0
    %196 = vmatprep.subr.mxu0 0.0
    %197 = vmatpush1.msra.mxu0 0.0
    %198 = vmatprep.subr.mxu0 0.0
    %199 = vmatpush1.msra.mxu0 0.0
    %200 = vmatprep.subr.mxu0 0.0
    %201 = vmatpush1.msra.mxu0 0.0
    %202 = vmatprep.subr.mxu0 0.0
    %203 = vmatpush1.msra.mxu0 0.0
    %204 = vmatprep.subr.mxu0 0.0
    %205 = vmatpush1.msra.mxu0 0.0
    %206 = vmatprep.subr.mxu0 0.0
    %207 = vmatpush1.msra.mxu0 0.0
    %208 = vmatprep.subr.mxu0 0.0
    %209 = vmatpush1.msra.mxu0 0.0
    %210 = vmatprep.subr.mxu0 0.0
    %211 = vmatpush1.msra.mxu0 0.0
    %212 = vmatprep.subr.mxu0 0.0
    %213 = vmatpush1.msra.mxu0 0.0
    %214 = vmatprep.subr.mxu0 0.0
    %215 = vmatpush1.msra.mxu0 0.0
    %216 = vmatprep.subr.mxu0 0.0
    %217 = vmatpush1.msra.mxu0 0.0
    %218 = vmatprep.subr.mxu0 0.0
    %219 = vmatpush1.msra.mxu0 0.0
    %220 = vmatprep.subr.mxu0 0.0
    %221 = vmatpush1.msra.mxu0 0.0
    %222 = vmatprep.mubr.f32.mxu0 0.0
    %223 = vmatmul.mubr.f32.gmra.mrb[0].mxu0 %v147
    %v224 = vpop.f32.mrb[0].mxu0
    %v225 = vadd.f32 %v144, %v224
    %v226 = vpop.f32.mrb[0].mxu0
    %227 = vmatprep.mubr.f32.mxu0 0.0
    %228 = vmatmul.mubr.f32.gmra.mrb[0].mxu0 %v150
    %v229 = vpop.f32.mrb[0].mxu0
    %v230 = vadd.f32 %v144, %v229
    %v231 = vpop.f32.mrb[0].mxu0
    %232 = vmatprep.mubr.f32.mxu0 0.0
    %233 = vmatmul.mubr.f32.gmra.mrb[0].mxu0 %v153
    %v234 = vpop.f32.mrb[0].mxu0
    %v235 = vadd.f32 %v144, %v234
    %v236 = vpop.f32.mrb[0].mxu0
    %237 = vmatprep.mubr.f32.mxu0 0.0
    %238 = vmatmul.mubr.f32.gmra.mrb[0].mxu0 %v156
    %v239 = vpop.f32.mrb[0].mxu0
    %v240 = vadd.f32 %v144, %v239
    %v241 = vpop.f32.mrb[0].mxu0
    %242 = vdwg.mxu0
    %243 = vst [vmem:[%s3] sm:$0xff] %v225
    %244 = vst [vmem:[%s3 + $0x8] sm:$0xff] %v230
    %245 = vst [vmem:[%s3 + $0x10] sm:$0xff] %v235
    %246 = vst [vmem:[%s3 + $0x18] sm:$0xff] %v240
    // Predicated region
    $region22: #{thermo_stable_head.1} parent=1 // pred_check
      _
    $region23: #{thermo_stable_head.1} parent=1 // pred_check_branch
      %248 = sbr.rel (0) target = $region25
    $region24: #{thermo_stable_head.1} parent=1 // pred_region
      _
    $region25: #{thermo_stable_head.1} parent=1 // pred_fallthru
      _
    // Predicated region
    $region26: #{thermo_stable_head.1} parent=1 // pred_check
      _
    $region27: #{thermo_stable_head.1} parent=1 // pred_check_branch
      %250 = sbr.rel (0) target = $region29
    $region28: #{thermo_stable_head.1} parent=1 // pred_region
      _
    $region29: #{thermo_stable_head.1} parent=1 // pred_fallthru
      _
    %251 = vsyncpa [#allocation3], 1
    %252 = vsyncpa [#allocation5], 1

</llo_original>
